<compile_context>
chip_gen: v7x
topology: tpu7x:2x2x1
jax: 0.10.0
libtpu: 0.0.40
codegen_flags: <defaults>
</compile_context>

<pallas_src>
import functools

import jax
import jax.numpy as jnp
from jax.experimental import pallas as pl
from jax.experimental.pallas import tpu as pltpu

EPS = 1e-5


def mlp_kernel(x_ref, w1_ref, vecs_ref, w2_ref, w3_ref, b3_ref, o_ref, *, hidden_valid):
    """One batch-tile of the full 3-layer MLP forward (eval mode).

    x_ref:    (tb, fin_p)   bf16
    w1_ref:   (fin_p, hid_p) bf16      w2_ref: (hid_p, hid_p) bf16     w3_ref: (hid_p, cls_p) bf16
    vecs_ref: (8, hid_p) f32  rows = [b1, g1, be1, b2, g2, be2, 0, 0]
    b3_ref:   (1, cls_p) f32
    o_ref:    (tb, cls_p) f32
    """
    hid_pad = w1_ref.shape[1]
    inv_h = 1.0 / float(hidden_valid)  # precomputed 1/H (avoids per-row divide)

    # Lane mask for the real (unpadded) hidden width; padded lanes stay exactly 0.
    lane = jax.lax.broadcasted_iota(jnp.int32, (1, hid_pad), 1)
    mask = (lane < hidden_valid).astype(jnp.float32)

    # Packed bias / LayerNorm parameter rows (static slices -> zero-cost views).
    b1, g1, be1 = vecs_ref[0:1, :], vecs_ref[1:2, :], vecs_ref[2:3, :]
    b2, g2, be2 = vecs_ref[3:4, :], vecs_ref[4:5, :], vecs_ref[5:6, :]

    def ln_relu(h, gamma, beta):
        # Padded lanes of h are exactly 0 (zero-padded weight cols / biases), so the mean
        # over valid lanes needs no extra mask multiply.
        mu = jnp.sum(h, axis=-1, keepdims=True) * inv_h
        d = (h - mu) * mask                                    # mask only for the variance term
        var = jnp.sum(d * d, axis=-1, keepdims=True) * inv_h
        y = d * jax.lax.rsqrt(var + EPS) * gamma + beta        # gamma/beta zero-padded -> lanes stay 0
        return jnp.maximum(y, 0.0)                             # ReLU; Dropout = identity (eval)

    # --- layer 1 --- (bf16 operands, f32 MXU accumulation)
    h = jnp.dot(x_ref[...], w1_ref[...], preferred_element_type=jnp.float32) + b1
    h = ln_relu(h, g1, be1)

    # --- layer 2 ---
    h = jnp.dot(h.astype(jnp.bfloat16), w2_ref[...],
                preferred_element_type=jnp.float32) + b2
    h = ln_relu(h, g2, be2)

    # --- layer 3 (no norm / activation) ---
    out = jnp.dot(h.astype(jnp.bfloat16), w3_ref[...],
                  preferred_element_type=jnp.float32) + b3_ref[...]
    o_ref[...] = out.astype(o_ref.dtype)


def _round_up(n, m):
    return ((n + m - 1) // m) * m


def _pad2(a, rows, cols, dtype=None):
    a = jnp.pad(a, ((0, rows - a.shape[0]), (0, cols - a.shape[1])))
    return a.astype(dtype) if dtype is not None else a


def _vmem_bytes(tb, fin_p, hid_p, cls_p):
    """Pessimistic VMEM estimate: weights possibly double-buffered + streamed tiles + temps."""
    w_bytes = 2 * 2 * (fin_p * hid_p + hid_p * hid_p + hid_p * cls_p)   # bf16, x2 buffers
    vec_bytes = 2 * 4 * (8 * hid_p + 8 * cls_p)                         # packed vecs + b3
    x_bytes = 2 * tb * fin_p * 2                                        # bf16 X tile, double-buffered
    o_bytes = 2 * tb * cls_p * 4                                        # f32 out tile, double-buffered
    act_bytes = 4 * tb * hid_p * 4                                      # intermediate activations
    return w_bytes + vec_bytes + x_bytes + o_bytes + act_bytes


def _choose_tb(B, fin_p, hid_p, cls_p):
    """Pick a sublane-aligned batch tile: minimize dead-row padding, amortize per-step
    overhead, prefer >= 2 grid steps (two-TC sharding), stay inside a safe VMEM budget."""
    budget = 56 * 1024 * 1024  # conservative (v7x per-TC VMEM is 64 MiB)
    best = None
    for tb in (1024, 512, 256, 128, 64, 32, 16, 8):
        if _vmem_bytes(tb, fin_p, hid_p, cls_p) > budget:
            continue
        b_p = _round_up(B, tb)
        steps = b_p // tb
        # effective cost: padded rows + per-step overhead (~ equivalent of 64 rows),
        # plus a penalty for leaving a TensorCore idle when the batch is splittable.
        cost = b_p + 64 * steps + (128 if (steps == 1 and B > 8) else 0)
        key = (cost, -tb)
        if best is None or key < best[0]:
            best = (key, tb)
    return best[1] if best is not None else 8


def neural_network_forward(x, params):
    """x: (B, input_size) float32.  params: dict of f32 weights (see init_params)."""
    B, fin = x.shape
    hidden = params["w1"].shape[1]
    classes = params["w3"].shape[1]

    # Lane-pad every feature dim to a multiple of 128 (vreg lane width / MXU width).
    fin_p = _round_up(fin, 128)
    hid_p = _round_up(hidden, 128)
    cls_p = _round_up(classes, 128)

    tb = _choose_tb(B, fin_p, hid_p, cls_p)
    b_p = _round_up(B, tb)

    # X: bf16 streamed operand.  Skip the pad copy entirely when already aligned.
    if b_p != B or fin_p != fin:
        xp = jnp.pad(x, ((0, b_p - B), (0, fin_p - fin))).astype(jnp.bfloat16)
    else:
        xp = x.astype(jnp.bfloat16)

    # Weights as bf16 (halves DMA bytes, native MXU dtype); bias / LN params stay f32.
    w1 = _pad2(params["w1"], fin_p, hid_p, jnp.bfloat16)
    w2 = _pad2(params["w2"], hid_p, hid_p, jnp.bfloat16)
    w3 = _pad2(params["w3"], hid_p, cls_p, jnp.bfloat16)

    # Pack the six (1, hidden) vectors into one aligned (8, hid_p) f32 block.
    def _vec(a):
        a = a.reshape(1, -1).astype(jnp.float32)
        return jnp.pad(a, ((0, 0), (0, hid_p - a.shape[1])))

    vecs = jnp.concatenate(
        [_vec(params["b1"]), _vec(params["g1"]), _vec(params["be1"]),
         _vec(params["b2"]), _vec(params["g2"]), _vec(params["be2"]),
         jnp.zeros((2, hid_p), jnp.float32)],
        axis=0)                                    # (8, hid_p)
    b3 = _pad2(params["b3"], 1, cls_p)             # (1, cls_p) f32

    grid = (b_p // tb,)

    def resident(shape):
        # Whole-array block whose index ignores the grid step -> fetched once, stays in VMEM.
        return pl.BlockSpec(shape, lambda i: (0, 0))

    in_specs = [
        pl.BlockSpec((tb, fin_p), lambda i: (i, 0)),   # X: streamed over the batch grid (bf16)
        resident((fin_p, hid_p)),                      # w1
        resident((8, hid_p)),                          # packed b1,g1,be1,b2,g2,be2
        resident((hid_p, hid_p)),                      # w2
        resident((hid_p, cls_p)),                      # w3
        resident((1, cls_p)),                          # b3
    ]
    out_spec = pl.BlockSpec((tb, cls_p), lambda i: (i, 0))

    # Computed scoped-VMEM limit (weights + double-buffered tiles + headroom),
    # clamped to sensible bounds across v5e/v6e/v7x.
    vmem_limit = int(min(100 * 1024 * 1024,
                         max(32 * 1024 * 1024,
                             1.25 * _vmem_bytes(tb, fin_p, hid_p, cls_p))))

    kernel = functools.partial(mlp_kernel, hidden_valid=hidden)

    out_p = pl.pallas_call(
        kernel,
        out_shape=jax.ShapeDtypeStruct((b_p, cls_p), jnp.float32),
        grid=grid,
        in_specs=in_specs,
        out_specs=out_spec,
        compiler_params=pltpu.CompilerParams(
            dimension_semantics=("parallel",),      # batch axis shards across TCs (v7x)
            vmem_limit_bytes=vmem_limit,
        ),
    )(xp, w1, vecs, w2, w3, b3)

    # Slice off batch / class padding outside the kernel, only when needed.
    if b_p != B or cls_p != classes:
        return out_p[:B, :classes]
    return out_p


def init_params(key, input_size, hidden_size, num_classes):
    """Deterministic synthetic parameters matching the PyTorch module's shapes."""
    ks = jax.random.split(key, 3)

    def linear_init(k, fan_in, fan_out):
        # torch.nn.Linear default: U(-1/sqrt(fan_in), 1/sqrt(fan_in))
        bound = 1.0 / jnp.sqrt(fan_in)
        kw, kb = jax.random.split(k)
        w = jax.random.uniform(kw, (fan_in, fan_out), jnp.float32, -bound, bound)
        b = jax.random.uniform(kb, (1, fan_out), jnp.float32, -bound, bound)
        return w, b

    w1, b1 = linear_init(ks[0], input_size, hidden_size)
    w2, b2 = linear_init(ks[1], hidden_size, hidden_size)
    w3, b3 = linear_init(ks[2], hidden_size, num_classes)

    return {
        "w1": w1, "b1": b1,
        "g1": jnp.ones((1, hidden_size), jnp.float32),
        "be1": jnp.zeros((1, hidden_size), jnp.float32),
        "w2": w2, "b2": b2,
        "g2": jnp.ones((1, hidden_size), jnp.float32),
        "be2": jnp.zeros((1, hidden_size), jnp.float32),
        "w3": w3, "b3": b3,
    }


def reference_forward(x, p):
    """Pure-JAX f32 reference of the PyTorch forward (eval mode: dropout = identity)."""
    def ln(h, g, b):
        mu = jnp.mean(h, axis=-1, keepdims=True)
        var = jnp.mean((h - mu) ** 2, axis=-1, keepdims=True)
        return (h - mu) / jnp.sqrt(var + EPS) * g + b

    h = x @ p["w1"] + p["b1"]
    h = jnp.maximum(ln(h, p["g1"], p["be1"]), 0.0)
    h = h @ p["w2"] + p["b2"]
    h = jnp.maximum(ln(h, p["g2"], p["be2"]), 0.0)
    return h @ p["w3"] + p["b3"]


if __name__ == "__main__":
    key = jax.random.PRNGKey(0)
    kx, kp = jax.random.split(key)

    batch, input_size, hidden_size, num_classes = 8, 64, 32, 10
    x = jax.random.normal(kx, (batch, input_size), jnp.float32)
    params = init_params(kp, input_size, hidden_size, num_classes)

    fwd = jax.jit(neural_network_forward)
    out = jax.block_until_ready(fwd(x, params))

    ref = reference_forward(x, params)
    assert out.shape == (batch, num_classes)
    # bf16 matmul operands (f32 accumulate) vs pure-f32 reference -> loose tolerance.
    assert jnp.allclose(out, ref, atol=5e-2, rtol=5e-2), \
        f"mismatch vs reference (max abs diff {jnp.max(jnp.abs(out - ref))})"

    print("KERNEL_OK")
</pallas_src>

<mosaic_0001>
module attributes {stable_mosaic.version = 11 : i64} {
  func.func @mlp_kernel(%arg0: i32, %arg1: memref<8x128xbf16, #tpu.memory_space<vmem>>, %arg2: memref<128x128xbf16, #tpu.memory_space<vmem>>, %arg3: memref<8x128xf32, #tpu.memory_space<vmem>>, %arg4: memref<128x128xbf16, #tpu.memory_space<vmem>>, %arg5: memref<128x128xbf16, #tpu.memory_space<vmem>>, %arg6: memref<1x128xf32, #tpu.memory_space<vmem>>, %arg7: memref<8x128xf32, #tpu.memory_space<vmem>>) attributes {dimension_semantics = [#tpu.dimension_semantics<parallel>], iteration_bounds = array<i64: 1>, scalar_prefetch = 0 : i64, scratch_operands = 0 : i64, tpu.core_type = #tpu.core_type<tc>, window_params = [{transform_indices = @transform_0, window_bounds = array<i64: 8, 128>}, {pipeline_mode = #tpu.pipeline_mode<synchronous>, transform_indices = @transform_1, window_bounds = array<i64: 128, 128>}, {pipeline_mode = #tpu.pipeline_mode<synchronous>, transform_indices = @transform_2, window_bounds = array<i64: 8, 128>}, {pipeline_mode = #tpu.pipeline_mode<synchronous>, transform_indices = @transform_3, window_bounds = array<i64: 128, 128>}, {pipeline_mode = #tpu.pipeline_mode<synchronous>, transform_indices = @transform_4, window_bounds = array<i64: 128, 128>}, {pipeline_mode = #tpu.pipeline_mode<synchronous>, transform_indices = @transform_5, window_bounds = array<i64: 1, 128>}, {transform_indices = @transform_6, window_bounds = array<i64: 8, 128>}]} {
    %0 = tpu.iota {dimensions = array<i32: 1>} : vector<1x128xi32>
    %c32_i32 = arith.constant 32 : i32
    %1 = vector.broadcast %c32_i32 : i32 to vector<1x128xi32>
    %2 = arith.cmpi slt, %0, %1 : vector<1x128xi32>
    %3 = arith.extui %2 : vector<1x128xi1> to vector<1x128xi32>
    %4 = arith.sitofp %3 : vector<1x128xi32> to vector<1x128xf32>
    %c0 = arith.constant 0 : index
    %c0_0 = arith.constant 0 : index
    %5 = vector.load %arg3[%c0, %c0_0] : memref<8x128xf32, #tpu.memory_space<vmem>>, vector<1x128xf32>
    %c1 = arith.constant 1 : index
    %c0_1 = arith.constant 0 : index
    %6 = vector.load %arg3[%c1, %c0_1] : memref<8x128xf32, #tpu.memory_space<vmem>>, vector<1x128xf32>
    %c2 = arith.constant 2 : index
    %c0_2 = arith.constant 0 : index
    %7 = vector.load %arg3[%c2, %c0_2] : memref<8x128xf32, #tpu.memory_space<vmem>>, vector<1x128xf32>
    %c3 = arith.constant 3 : index
    %c0_3 = arith.constant 0 : index
    %8 = vector.load %arg3[%c3, %c0_3] : memref<8x128xf32, #tpu.memory_space<vmem>>, vector<1x128xf32>
    %c4 = arith.constant 4 : index
    %c0_4 = arith.constant 0 : index
    %9 = vector.load %arg3[%c4, %c0_4] : memref<8x128xf32, #tpu.memory_space<vmem>>, vector<1x128xf32>
    %c5 = arith.constant 5 : index
    %c0_5 = arith.constant 0 : index
    %10 = vector.load %arg3[%c5, %c0_5] : memref<8x128xf32, #tpu.memory_space<vmem>>, vector<1x128xf32>
    %c0_6 = arith.constant 0 : index
    %c0_7 = arith.constant 0 : index
    %11 = vector.load %arg1[%c0_6, %c0_7] : memref<8x128xbf16, #tpu.memory_space<vmem>>, vector<8x128xbf16>
    %c0_8 = arith.constant 0 : index
    %c0_9 = arith.constant 0 : index
    %12 = vector.load %arg2[%c0_8, %c0_9] : memref<128x128xbf16, #tpu.memory_space<vmem>>, vector<128x128xbf16>
    %cst = arith.constant dense<0.000000e+00> : vector<8x128xf32>
    %13 = tpu.matmul %11, %12, %cst {dimension_numbers = #tpu.dot_dimension_numbers<[1], [0], [0], [1], [0, 0, 1, 1], [], []>} : vector<8x128xbf16>, vector<128x128xbf16>, vector<8x128xf32> -> vector<8x128xf32>
    %14 = vector.broadcast %5 : vector<1x128xf32> to vector<8x128xf32>
    %15 = arith.addf %13, %14 : vector<8x128xf32>
    %cst_10 = arith.constant dense<0.000000e+00> : vector<8xf32>
    %16 = vector.multi_reduction <add>, %15, %cst_10 [1] : vector<8x128xf32> to vector<8xf32>
    %17 = vector.shape_cast %16 : vector<8xf32> to vector<8x1xf32>
    %cst_11 = arith.constant 3.125000e-02 : f32
    %18 = vector.broadcast %cst_11 : f32 to vector<8x1xf32>
    %19 = arith.mulf %17, %18 : vector<8x1xf32>
    %20 = vector.broadcast %19 : vector<8x1xf32> to vector<8x128xf32>
    %21 = arith.subf %15, %20 : vector<8x128xf32>
    %22 = vector.broadcast %4 : vector<1x128xf32> to vector<8x128xf32>
    %23 = arith.mulf %21, %22 : vector<8x128xf32>
    %24 = arith.mulf %23, %23 : vector<8x128xf32>
    %cst_12 = arith.constant dense<0.000000e+00> : vector<8xf32>
    %25 = vector.multi_reduction <add>, %24, %cst_12 [1] : vector<8x128xf32> to vector<8xf32>
    %26 = vector.shape_cast %25 : vector<8xf32> to vector<8x1xf32>
    %cst_13 = arith.constant 3.125000e-02 : f32
    %27 = vector.broadcast %cst_13 : f32 to vector<8x1xf32>
    %28 = arith.mulf %26, %27 : vector<8x1xf32>
    %cst_14 = arith.constant 9.99999974E-6 : f32
    %29 = vector.broadcast %cst_14 : f32 to vector<8x1xf32>
    %30 = arith.addf %28, %29 : vector<8x1xf32>
    %31 = math.rsqrt %30 : vector<8x1xf32>
    %32 = vector.broadcast %31 : vector<8x1xf32> to vector<8x128xf32>
    %33 = arith.mulf %23, %32 : vector<8x128xf32>
    %34 = vector.broadcast %6 : vector<1x128xf32> to vector<8x128xf32>
    %35 = arith.mulf %33, %34 : vector<8x128xf32>
    %36 = vector.broadcast %7 : vector<1x128xf32> to vector<8x128xf32>
    %37 = arith.addf %35, %36 : vector<8x128xf32>
    %cst_15 = arith.constant 0.000000e+00 : f32
    %38 = vector.broadcast %cst_15 : f32 to vector<8x128xf32>
    %39 = arith.maximumf %37, %38 : vector<8x128xf32>
    %40 = arith.truncf %39 : vector<8x128xf32> to vector<8x128xbf16>
    %c0_16 = arith.constant 0 : index
    %c0_17 = arith.constant 0 : index
    %41 = vector.load %arg4[%c0_16, %c0_17] : memref<128x128xbf16, #tpu.memory_space<vmem>>, vector<128x128xbf16>
    %cst_18 = arith.constant dense<0.000000e+00> : vector<8x128xf32>
    %42 = tpu.matmul %40, %41, %cst_18 {dimension_numbers = #tpu.dot_dimension_numbers<[1], [0], [0], [1], [0, 0, 1, 1], [], []>} : vector<8x128xbf16>, vector<128x128xbf16>, vector<8x128xf32> -> vector<8x128xf32>
    %43 = vector.broadcast %8 : vector<1x128xf32> to vector<8x128xf32>
    %44 = arith.addf %42, %43 : vector<8x128xf32>
    %cst_19 = arith.constant dense<0.000000e+00> : vector<8xf32>
    %45 = vector.multi_reduction <add>, %44, %cst_19 [1] : vector<8x128xf32> to vector<8xf32>
    %46 = vector.shape_cast %45 : vector<8xf32> to vector<8x1xf32>
    %cst_20 = arith.constant 3.125000e-02 : f32
    %47 = vector.broadcast %cst_20 : f32 to vector<8x1xf32>
    %48 = arith.mulf %46, %47 : vector<8x1xf32>
    %49 = vector.broadcast %48 : vector<8x1xf32> to vector<8x128xf32>
    %50 = arith.subf %44, %49 : vector<8x128xf32>
    %51 = vector.broadcast %4 : vector<1x128xf32> to vector<8x128xf32>
    %52 = arith.mulf %50, %51 : vector<8x128xf32>
    %53 = arith.mulf %52, %52 : vector<8x128xf32>
    %cst_21 = arith.constant dense<0.000000e+00> : vector<8xf32>
    %54 = vector.multi_reduction <add>, %53, %cst_21 [1] : vector<8x128xf32> to vector<8xf32>
    %55 = vector.shape_cast %54 : vector<8xf32> to vector<8x1xf32>
    %cst_22 = arith.constant 3.125000e-02 : f32
    %56 = vector.broadcast %cst_22 : f32 to vector<8x1xf32>
    %57 = arith.mulf %55, %56 : vector<8x1xf32>
    %cst_23 = arith.constant 9.99999974E-6 : f32
    %58 = vector.broadcast %cst_23 : f32 to vector<8x1xf32>
    %59 = arith.addf %57, %58 : vector<8x1xf32>
    %60 = math.rsqrt %59 : vector<8x1xf32>
    %61 = vector.broadcast %60 : vector<8x1xf32> to vector<8x128xf32>
    %62 = arith.mulf %52, %61 : vector<8x128xf32>
    %63 = vector.broadcast %9 : vector<1x128xf32> to vector<8x128xf32>
    %64 = arith.mulf %62, %63 : vector<8x128xf32>
    %65 = vector.broadcast %10 : vector<1x128xf32> to vector<8x128xf32>
    %66 = arith.addf %64, %65 : vector<8x128xf32>
    %cst_24 = arith.constant 0.000000e+00 : f32
    %67 = vector.broadcast %cst_24 : f32 to vector<8x128xf32>
    %68 = arith.maximumf %66, %67 : vector<8x128xf32>
    %69 = arith.truncf %68 : vector<8x128xf32> to vector<8x128xbf16>
    %c0_25 = arith.constant 0 : index
    %c0_26 = arith.constant 0 : index
    %70 = vector.load %arg5[%c0_25, %c0_26] : memref<128x128xbf16, #tpu.memory_space<vmem>>, vector<128x128xbf16>
    %cst_27 = arith.constant dense<0.000000e+00> : vector<8x128xf32>
    %71 = tpu.matmul %69, %70, %cst_27 {dimension_numbers = #tpu.dot_dimension_numbers<[1], [0], [0], [1], [0, 0, 1, 1], [], []>} : vector<8x128xbf16>, vector<128x128xbf16>, vector<8x128xf32> -> vector<8x128xf32>
    %c0_28 = arith.constant 0 : index
    %c0_29 = arith.constant 0 : index
    %72 = vector.load %arg6[%c0_28, %c0_29] : memref<1x128xf32, #tpu.memory_space<vmem>>, vector<1x128xf32>
    %73 = vector.broadcast %72 : vector<1x128xf32> to vector<8x128xf32>
    %74 = arith.addf %71, %73 : vector<8x128xf32>
    %c0_30 = arith.constant 0 : index
    %c0_31 = arith.constant 0 : index
    %75 = vector.load %arg7[%c0_30, %c0_31] : memref<8x128xf32, #tpu.memory_space<vmem>>, vector<8x128xf32>
    tpu.vector_store %arg7[%c0_30, %c0_31], %74 {strides = array<i32>} : memref<8x128xf32, #tpu.memory_space<vmem>>, vector<8x128xf32>,
    return
  }
  func.func @transform_0(%arg0: i32) -> (i32, i32) {
    %c0_i32 = arith.constant 0 : i32
    %c0_i32_0 = arith.constant 0 : i32
    return %arg0, %c0_i32 : i32, i32
  }
  func.func @transform_1(%arg0: i32) -> (i32, i32) {
    %c0_i32 = arith.constant 0 : i32
    %c0_i32_0 = arith.constant 0 : i32
    %c0_i32_1 = arith.constant 0 : i32
    return %c0_i32, %c0_i32_0 : i32, i32
  }
  func.func @transform_2(%arg0: i32) -> (i32, i32) {
    %c0_i32 = arith.constant 0 : i32
    %c0_i32_0 = arith.constant 0 : i32
    %c0_i32_1 = arith.constant 0 : i32
    return %c0_i32, %c0_i32_0 : i32, i32
  }
  func.func @transform_3(%arg0: i32) -> (i32, i32) {
    %c0_i32 = arith.constant 0 : i32
    %c0_i32_0 = arith.constant 0 : i32
    %c0_i32_1 = arith.constant 0 : i32
    return %c0_i32, %c0_i32_0 : i32, i32
  }
  func.func @transform_4(%arg0: i32) -> (i32, i32) {
    %c0_i32 = arith.constant 0 : i32
    %c0_i32_0 = arith.constant 0 : i32
    %c0_i32_1 = arith.constant 0 : i32
    return %c0_i32, %c0_i32_0 : i32, i32
  }
  func.func @transform_5(%arg0: i32) -> (i32, i32) {
    %c0_i32 = arith.constant 0 : i32
    %c0_i32_0 = arith.constant 0 : i32
    %c0_i32_1 = arith.constant 0 : i32
    return %c0_i32, %c0_i32_0 : i32, i32
  }
  func.func @transform_6(%arg0: i32) -> (i32, i32) {
    %c0_i32 = arith.constant 0 : i32
    %c0_i32_0 = arith.constant 0 : i32
    return %arg0, %c0_i32 : i32, i32
  }
}

</mosaic_0001>

<llo_original>
// kernel: neural_network_forward.1
$region0: #{neural_network_forward.1}
  #allocation0 [shape = 'u32[]', space=smem, size = 0x4, offset = 0x4, fixed_abs, tag = 'smem constant byte address 0x4 - core index']
  #allocation1 [shape = 'u32[144,128]{1,0:T(1,128)}', space=vmem, size = 0x12000, scoped, tag = 'internal scratch']
  %s0 = inlined_call_operand.vmem [shape: bf16[8,128], index: 0, kind: input, shape index: {}]
  %s1 = inlined_call_operand.vmem [shape: bf16[128,128], index: 1, kind: input, shape index: {}]
  %s2 = inlined_call_operand.vmem [shape: f32[8,128], index: 2, kind: input, shape index: {}]
  %s3 = inlined_call_operand.vmem [shape: bf16[128,128], index: 3, kind: input, shape index: {}]
  %s4 = inlined_call_operand.vmem [shape: bf16[128,128], index: 4, kind: input, shape index: {}]
  %s5 = inlined_call_operand.vmem [shape: f32[1,128], index: 5, kind: input, shape index: {}]
  %s6 = inlined_call_operand.hbm [shape: f32[8,128], index: 6, kind: output, shape index: {}]
  %s7 = sld [smem:[#allocation0]]
  $region34: #{neural_network_forward.1} parent=0
    _
  %s9 = ssub.s32 1, %s7
  %s10 = scalar_select 0, %s9, %s7
  $region1: #{neural_network_forward.1} parent=0
    #allocation2 [shape = 'u8[4096]{0}', space=vmem, size = 0x1000, scoped, tag = 'output window, operand 0, single buffered']
    #allocation3 [shape = 's32[1]{0}', space=sflag, size = 0x4, scoped, tag = 'scoped memory for neural_network_forward.1']
    %11 = vsyncpa [#allocation3], 0
    // Predicated region
    $region2: #{neural_network_forward.1} parent=1 // pred_check
      _
    $region3: #{neural_network_forward.1} parent=1 // pred_check_branch
      %13 = sbr.rel (0) target = $region5
    $region4: #{neural_network_forward.1} parent=1 // pred_region
      _
    $region5: #{neural_network_forward.1} parent=1 // pred_fallthru
      _
    // Predicated region
    $region6: #{neural_network_forward.1} parent=1 // pred_check
      _
    $region7: #{neural_network_forward.1} parent=1 // pred_check_branch
      %15 = sbr.rel (0) target = $region9
    $region8: #{neural_network_forward.1} parent=1 // pred_region
      _
    $region9: #{neural_network_forward.1} parent=1 // pred_fallthru
      _
    // Predicated region
    $region10: #{neural_network_forward.1} parent=1 // pred_check
      _
    $region11: #{neural_network_forward.1} parent=1 // pred_check_branch
      %17 = sbr.rel (0) target = $region13
    $region12: #{neural_network_forward.1} parent=1 // pred_region
      _
    $region13: #{neural_network_forward.1} parent=1 // pred_fallthru
      _
    // Predicated region
    $region14: #{neural_network_forward.1} parent=1 // pred_check
      _
    $region15: #{neural_network_forward.1} parent=1 // pred_check_branch
      %19 = sbr.rel (0) target = $region17
    $region16: #{neural_network_forward.1} parent=1 // pred_region
      _
    $region17: #{neural_network_forward.1} parent=1 // pred_fallthru
      _
    // Predicated region
    $region18: #{neural_network_forward.1} parent=1 // pred_check
      _
    $region19: #{neural_network_forward.1} parent=1 // pred_check_branch
      %21 = sbr.rel (0) target = $region21
    $region20: #{neural_network_forward.1} parent=1 // pred_region
      _
    $region21: #{neural_network_forward.1} parent=1 // pred_fallthru
      _
    // Predicated region
    $region22: #{neural_network_forward.1} parent=1 // pred_check
      _
    $region23: #{neural_network_forward.1} parent=1 // pred_check_branch
      %23 = sbr.rel (0) target = $region25
    $region24: #{neural_network_forward.1} parent=1 // pred_region
      _
    $region25: #{neural_network_forward.1} parent=1 // pred_fallthru
      _
    %v25 = vlaneseq
    %v26 = vand.u32 %v25, 127
    %vm27 = vcmp.lt.s32.totalorder %v26, 32
    %v28 = vsel %vm27, 1, 0
    %v29 = vcvt.s32.f32 %v28
    %v30 = vld [vmem:[%s2] sm:$0x1]
    %v31 = vld [vmem:[%s2 + $0x1] sm:$0x1]
    %v32 = vld [vmem:[%s2 + $0x2] sm:$0x1]
    %v33 = vld [vmem:[%s2 + $0x3] sm:$0x1]
    %v34 = vld [vmem:[%s2 + $0x4] sm:$0x1]
    %v35 = vld [vmem:[%s2 + $0x5] sm:$0x1]
    %v36 = vld [vmem:[%s0] sm:$0xf]
    %v37 = vld [vmem:[%s1] sm:$0xf]
    %v38 = vld [vmem:[%s1 + $0x4] sm:$0xf]
    %v39 = vld [vmem:[%s1 + $0x8] sm:$0xf]
    %v40 = vld [vmem:[%s1 + $0xc] sm:$0xf]
    %v41 = vld [vmem:[%s1 + $0x10] sm:$0xf]
    %v42 = vld [vmem:[%s1 + $0x14] sm:$0xf]
    %v43 = vld [vmem:[%s1 + $0x18] sm:$0xf]
    %v44 = vld [vmem:[%s1 + $0x1c] sm:$0xf]
    %v45 = vld [vmem:[%s1 + $0x20] sm:$0xf]
    %v46 = vld [vmem:[%s1 + $0x24] sm:$0xf]
    %v47 = vld [vmem:[%s1 + $0x28] sm:$0xf]
    %v48 = vld [vmem:[%s1 + $0x2c] sm:$0xf]
    %v49 = vld [vmem:[%s1 + $0x30] sm:$0xf]
    %v50 = vld [vmem:[%s1 + $0x34] sm:$0xf]
    %v51 = vld [vmem:[%s1 + $0x38] sm:$0xf]
    %v52 = vld [vmem:[%s1 + $0x3c] sm:$0xf]
    %v53 = vlaneseq
    %v54 = vshrl.u32 %v53, 7
    %v55 = vsub.s32 0, %v54
    %v56 = vrot.slane %v30, %v55
    %v73 = vunpack.c.l.b16 %v37
    %v74 = vunpack.c.l.b16 %v38
    %v75 = vunpack.c.l.b16 %v39
    %v76 = vunpack.c.l.b16 %v40
    %v77 = vunpack.c.l.b16 %v41
    %v78 = vunpack.c.l.b16 %v42
    %v79 = vunpack.c.l.b16 %v43
    %v80 = vunpack.c.l.b16 %v44
    %v81 = vunpack.c.l.b16 %v45
    %v82 = vunpack.c.l.b16 %v46
    %v83 = vunpack.c.l.b16 %v47
    %v84 = vunpack.c.l.b16 %v48
    %v85 = vunpack.c.l.b16 %v49
    %v86 = vunpack.c.l.b16 %v50
    %v87 = vunpack.c.l.b16 %v51
    %v88 = vunpack.c.l.b16 %v52
    %v89 = vpack.c.b16 %v74, %v73
    %v90 = vpack.c.b16 %v76, %v75
    %v91 = vpack.c.b16 %v78, %v77
    %v92 = vpack.c.b16 %v80, %v79
    %v93 = vpack.c.b16 %v82, %v81
    %v94 = vpack.c.b16 %v84, %v83
    %v95 = vpack.c.b16 %v86, %v85
    %v96 = vpack.c.b16 %v88, %v87
    %105 = vmatprep.subr.bf16.mxu0 0
    %106 = vmatpush1.bf16.msra.mxu0 %v89
    %107 = vmatprep.subr.bf16.mxu0 0
    %108 = vmatpush1.bf16.msra.mxu0 %v90
    %109 = vmatprep.subr.bf16.mxu0 0
    %110 = vmatpush1.bf16.msra.mxu0 %v91
    %111 = vmatprep.subr.bf16.mxu0 0
    %112 = vmatpush1.bf16.msra.mxu0 %v92
    %113 = vmatprep.subr.bf16.mxu0 0
    %114 = vmatpush1.bf16.msra.mxu0 %v93
    %115 = vmatprep.subr.bf16.mxu0 0
    %116 = vmatpush1.bf16.msra.mxu0 %v94
    %117 = vmatprep.subr.bf16.mxu0 0
    %118 = vmatpush1.bf16.msra.mxu0 %v95
    %119 = vmatprep.subr.bf16.mxu0 0
    %120 = vmatpush1.bf16.msra.mxu0 %v96
    %121 = vmatprep.subr.bf16.mxu0 0
    %122 = vmatpush1.bf16.msra.mxu0 0
    %123 = vmatprep.subr.bf16.mxu0 0
    %124 = vmatpush1.bf16.msra.mxu0 0
    %125 = vmatprep.subr.bf16.mxu0 0
    %126 = vmatpush1.bf16.msra.mxu0 0
    %127 = vmatprep.subr.bf16.mxu0 0
    %128 = vmatpush1.bf16.msra.mxu0 0
    %129 = vmatprep.subr.bf16.mxu0 0
    %130 = vmatpush1.bf16.msra.mxu0 0
    %131 = vmatprep.subr.bf16.mxu0 0
    %132 = vmatpush1.bf16.msra.mxu0 0
    %133 = vmatprep.subr.bf16.mxu0 0
    %134 = vmatpush1.bf16.msra.mxu0 0
    %135 = vmatprep.subr.bf16.mxu0 0
    %136 = vmatpush1.bf16.msra.mxu0 0
    %137 = vmatprep.mubr.bf16.mxu0 0
    %138 = vmatmul.mubr.bf16.gmra.mrb[0].mxu0 %v36
    %v139 = vpop.f32.mrb[0].mxu0
    %v140 = vadd.f32 %v56, %v139
    %v141 = vpop.f32.mrb[0].mxu0
    %v142 = vpop.f32.mrb[0].mxu0
    %v143 = vpop.f32.mrb[0].mxu0
    %144 = vdwg.mxu0
    %145 = vadd.xlane.f32.xlu0 %v140
    %v146 = vpop.xlane.xlu0 %145
    %v147 = vmul.f32 %v146, 0.03125
    %v148 = vsub.f32 %v140, %v147
    %v149 = vmul.f32 %v148, %v29
    %v150 = vmul.f32 %v149, %v149
    %151 = vadd.xlane.f32.xlu0 %v150
    %v152 = vpop.xlane.xlu0 %151
    %v153 = vmul.f32 %v152, 0.03125
    %v154 = vadd.f32 %v153, 1e-05
    %v155 = vrsqrt.pop %v154
    %v156 = vmul.f32 %v149, %v155
    %v157 = vlaneseq
    %v158 = vshrl.u32 %v157, 7
    %v159 = vsub.s32 0, %v158
    %v160 = vrot.slane %v31, %v159
    %v161 = vmul.f32 %v156, %v160
    %v162 = vlaneseq
    %v163 = vshrl.u32 %v162, 7
    %v164 = vsub.s32 0, %v163
    %v165 = vrot.slane %v32, %v164
    %v166 = vadd.f32 %v161, %v165
    %v167 = vmax.f32 %v166, 0.0
    %v168 = vpack.c.bf16 %v167, %v167
    %v169 = vld [vmem:[%s3] sm:$0xf]
    %v170 = vld [vmem:[%s3 + $0x4] sm:$0xf]
    %v171 = vld [vmem:[%s3 + $0x8] sm:$0xf]
    %v172 = vld [vmem:[%s3 + $0xc] sm:$0xf]
    %v173 = vld [vmem:[%s3 + $0x10] sm:$0xf]
    %v174 = vld [vmem:[%s3 + $0x14] sm:$0xf]
    %v175 = vld [vmem:[%s3 + $0x18] sm:$0xf]
    %v176 = vld [vmem:[%s3 + $0x1c] sm:$0xf]
    %v177 = vld [vmem:[%s3 + $0x20] sm:$0xf]
    %v178 = vld [vmem:[%s3 + $0x24] sm:$0xf]
    %v179 = vld [vmem:[%s3 + $0x28] sm:$0xf]
    %v180 = vld [vmem:[%s3 + $0x2c] sm:$0xf]
    %v181 = vld [vmem:[%s3 + $0x30] sm:$0xf]
    %v182 = vld [vmem:[%s3 + $0x34] sm:$0xf]
    %v183 = vld [vmem:[%s3 + $0x38] sm:$0xf]
    %v184 = vld [vmem:[%s3 + $0x3c] sm:$0xf]
    %v185 = vlaneseq
    %v186 = vshrl.u32 %v185, 7
    %v187 = vsub.s32 0, %v186
    %v188 = vrot.slane %v33, %v187
    %v205 = vunpack.c.l.b16 %v169
    %v206 = vunpack.c.l.b16 %v170
    %v207 = vunpack.c.l.b16 %v171
    %v208 = vunpack.c.l.b16 %v172
    %v209 = vunpack.c.l.b16 %v173
    %v210 = vunpack.c.l.b16 %v174
    %v211 = vunpack.c.l.b16 %v175
    %v212 = vunpack.c.l.b16 %v176
    %v213 = vunpack.c.l.b16 %v177
    %v214 = vunpack.c.l.b16 %v178
    %v215 = vunpack.c.l.b16 %v179
    %v216 = vunpack.c.l.b16 %v180
    %v217 = vunpack.c.l.b16 %v181
    %v218 = vunpack.c.l.b16 %v182
    %v219 = vunpack.c.l.b16 %v183
    %v220 = vunpack.c.l.b16 %v184
    %v221 = vpack.c.b16 %v206, %v205
    %v222 = vpack.c.b16 %v208, %v207
    %v223 = vpack.c.b16 %v210, %v209
    %v224 = vpack.c.b16 %v212, %v211
    %v225 = vpack.c.b16 %v214, %v213
    %v226 = vpack.c.b16 %v216, %v215
    %v227 = vpack.c.b16 %v218, %v217
    %v228 = vpack.c.b16 %v220, %v219
    %237 = vmatprep.subr.bf16.mxu0 0
    %238 = vmatpush1.bf16.msra.mxu0 %v221
    %239 = vmatprep.subr.bf16.mxu0 0
    %240 = vmatpush1.bf16.msra.mxu0 %v222
    %241 = vmatprep.subr.bf16.mxu0 0
    %242 = vmatpush1.bf16.msra.mxu0 %v223
    %243 = vmatprep.subr.bf16.mxu0 0
    %244 = vmatpush1.bf16.msra.mxu0 %v224
    %245 = vmatprep.subr.bf16.mxu0 0
    %246 = vmatpush1.bf16.msra.mxu0 %v225
    %247 = vmatprep.subr.bf16.mxu0 0
    %248 = vmatpush1.bf16.msra.mxu0 %v226
    %249 = vmatprep.subr.bf16.mxu0 0
    %250 = vmatpush1.bf16.msra.mxu0 %v227
    %251 = vmatprep.subr.bf16.mxu0 0
    %252 = vmatpush1.bf16.msra.mxu0 %v228
    %253 = vmatprep.subr.bf16.mxu0 0
    %254 = vmatpush1.bf16.msra.mxu0 0
    %255 = vmatprep.subr.bf16.mxu0 0
    %256 = vmatpush1.bf16.msra.mxu0 0
    %257 = vmatprep.subr.bf16.mxu0 0
    %258 = vmatpush1.bf16.msra.mxu0 0
    %259 = vmatprep.subr.bf16.mxu0 0
    %260 = vmatpush1.bf16.msra.mxu0 0
    %261 = vmatprep.subr.bf16.mxu0 0
    %262 = vmatpush1.bf16.msra.mxu0 0
    %263 = vmatprep.subr.bf16.mxu0 0
    %264 = vmatpush1.bf16.msra.mxu0 0
    %265 = vmatprep.subr.bf16.mxu0 0
    %266 = vmatpush1.bf16.msra.mxu0 0
    %267 = vmatprep.subr.bf16.mxu0 0
    %268 = vmatpush1.bf16.msra.mxu0 0
    %269 = vmatprep.mubr.bf16.mxu0 0
    %270 = vmatmul.mubr.bf16.gmra.mrb[0].mxu0 %v168
    %v271 = vpop.f32.mrb[0].mxu0
    %v272 = vadd.f32 %v188, %v271
    %v273 = vpop.f32.mrb[0].mxu0
    %v274 = vpop.f32.mrb[0].mxu0
    %v275 = vpop.f32.mrb[0].mxu0
    %276 = vdwg.mxu0
    %277 = vadd.xlane.f32.xlu0 %v272
    %v278 = vpop.xlane.xlu0 %277
    %v279 = vmul.f32 %v278, 0.03125
    %v280 = vsub.f32 %v272, %v279
    %v281 = vmul.f32 %v280, %v29
    %v282 = vmul.f32 %v281, %v281
    %283 = vadd.xlane.f32.xlu0 %v282
    %v284 = vpop.xlane.xlu0 %283
    %v285 = vmul.f32 %v284, 0.03125
    %v286 = vadd.f32 %v285, 1e-05
    %v287 = vrsqrt.pop %v286
    %v288 = vmul.f32 %v281, %v287
    %v289 = vlaneseq
    %v290 = vshrl.u32 %v289, 7
    %v291 = vsub.s32 0, %v290
    %v292 = vrot.slane %v34, %v291
    %v293 = vmul.f32 %v288, %v292
    %v294 = vlaneseq
    %v295 = vshrl.u32 %v294, 7
    %v296 = vsub.s32 0, %v295
    %v297 = vrot.slane %v35, %v296
    %v298 = vadd.f32 %v293, %v297
    %v299 = vmax.f32 %v298, 0.0
    %v300 = vpack.c.bf16 %v299, %v299
    %v301 = vld [vmem:[%s4] sm:$0xf]
    %v302 = vld [vmem:[%s4 + $0x4] sm:$0xf]
    %v303 = vld [vmem:[%s4 + $0x8] sm:$0xf]
    %v304 = vld [vmem:[%s4 + $0xc] sm:$0xf]
    %v305 = vld [vmem:[%s4 + $0x10] sm:$0xf]
    %v306 = vld [vmem:[%s4 + $0x14] sm:$0xf]
    %v307 = vld [vmem:[%s4 + $0x18] sm:$0xf]
    %v308 = vld [vmem:[%s4 + $0x1c] sm:$0xf]
    %v309 = vld [vmem:[%s4 + $0x20] sm:$0xf]
    %v310 = vld [vmem:[%s4 + $0x24] sm:$0xf]
    %v311 = vld [vmem:[%s4 + $0x28] sm:$0xf]
    %v312 = vld [vmem:[%s4 + $0x2c] sm:$0xf]
    %v313 = vld [vmem:[%s4 + $0x30] sm:$0xf]
    %v314 = vld [vmem:[%s4 + $0x34] sm:$0xf]
    %v315 = vld [vmem:[%s4 + $0x38] sm:$0xf]
    %v316 = vld [vmem:[%s4 + $0x3c] sm:$0xf]
    %v317 = vld [vmem:[%s5] sm:$0x1]
    %v319 = vlaneseq
    %v320 = vshrl.u32 %v319, 7
    %v321 = vsub.s32 0, %v320
    %v322 = vrot.slane %v317, %v321
    %v340 = vunpack.c.l.b16 %v301
    %v341 = vunpack.c.l.b16 %v302
    %v342 = vunpack.c.l.b16 %v303
    %v343 = vunpack.c.l.b16 %v304
    %v344 = vunpack.c.l.b16 %v305
    %v345 = vunpack.c.l.b16 %v306
    %v346 = vunpack.c.l.b16 %v307
    %v347 = vunpack.c.l.b16 %v308
    %v348 = vunpack.c.l.b16 %v309
    %v349 = vunpack.c.l.b16 %v310
    %v350 = vunpack.c.l.b16 %v311
    %v351 = vunpack.c.l.b16 %v312
    %v352 = vunpack.c.l.b16 %v313
    %v353 = vunpack.c.l.b16 %v314
    %v354 = vunpack.c.l.b16 %v315
    %v355 = vunpack.c.l.b16 %v316
    %v356 = vpack.c.b16 %v341, %v340
    %v357 = vpack.c.b16 %v343, %v342
    %v358 = vpack.c.b16 %v345, %v344
    %v359 = vpack.c.b16 %v347, %v346
    %v360 = vpack.c.b16 %v349, %v348
    %v361 = vpack.c.b16 %v351, %v350
    %v362 = vpack.c.b16 %v353, %v352
    %v363 = vpack.c.b16 %v355, %v354
    %372 = vmatprep.subr.bf16.mxu0 0
    %373 = vmatpush1.bf16.msra.mxu0 %v356
    %374 = vmatprep.subr.bf16.mxu0 0
    %375 = vmatpush1.bf16.msra.mxu0 %v357
    %376 = vmatprep.subr.bf16.mxu0 0
    %377 = vmatpush1.bf16.msra.mxu0 %v358
    %378 = vmatprep.subr.bf16.mxu0 0
    %379 = vmatpush1.bf16.msra.mxu0 %v359
    %380 = vmatprep.subr.bf16.mxu0 0
    %381 = vmatpush1.bf16.msra.mxu0 %v360
    %382 = vmatprep.subr.bf16.mxu0 0
    %383 = vmatpush1.bf16.msra.mxu0 %v361
    %384 = vmatprep.subr.bf16.mxu0 0
    %385 = vmatpush1.bf16.msra.mxu0 %v362
    %386 = vmatprep.subr.bf16.mxu0 0
    %387 = vmatpush1.bf16.msra.mxu0 %v363
    %388 = vmatprep.subr.bf16.mxu0 0
    %389 = vmatpush1.bf16.msra.mxu0 0
    %390 = vmatprep.subr.bf16.mxu0 0
    %391 = vmatpush1.bf16.msra.mxu0 0
    %392 = vmatprep.subr.bf16.mxu0 0
    %393 = vmatpush1.bf16.msra.mxu0 0
    %394 = vmatprep.subr.bf16.mxu0 0
    %395 = vmatpush1.bf16.msra.mxu0 0
    %396 = vmatprep.subr.bf16.mxu0 0
    %397 = vmatpush1.bf16.msra.mxu0 0
    %398 = vmatprep.subr.bf16.mxu0 0
    %399 = vmatpush1.bf16.msra.mxu0 0
    %400 = vmatprep.subr.bf16.mxu0 0
    %401 = vmatpush1.bf16.msra.mxu0 0
    %402 = vmatprep.subr.bf16.mxu0 0
    %403 = vmatpush1.bf16.msra.mxu0 0
    %404 = vmatprep.mubr.bf16.mxu0 0
    %405 = vmatmul.mubr.bf16.gmra.mrb[0].mxu0 %v300
    %v406 = vpop.f32.mrb[0].mxu0
    %v407 = vadd.f32 %v322, %v406
    %v408 = vpop.f32.mrb[0].mxu0
    %v409 = vpop.f32.mrb[0].mxu0
    %v410 = vpop.f32.mrb[0].mxu0
    %411 = vdwg.mxu0
    %412 = vst [vmem:[#allocation2] sm:$0xff] %v407
    // Predicated region
    $region26: #{neural_network_forward.1} parent=1 // pred_check
      _
    $region27: #{neural_network_forward.1} parent=1 // pred_check_branch
      %414 = sbr.rel (0) target = $region29
    $region28: #{neural_network_forward.1} parent=1 // pred_region
      %s416 = ssub.s32 128, 128
      %417 = vsyncadd [#allocation3], %s416
      %s419 = sshll.u32 [#allocation2], 4
      %s420 = int_to_ptr.vmem [resolvable:$true] %s419
      %422 = dma.vmem_to_hbm [thread:$0]  %s420, 128, %s6, [#allocation3]
    $region29: #{neural_network_forward.1} parent=1 // pred_fallthru
      _
    // Predicated region
    $region30: #{neural_network_forward.1} parent=1 // pred_check
      _
    $region31: #{neural_network_forward.1} parent=1 // pred_check_branch
      %424 = sbr.rel (0) target = $region33
    $region32: #{neural_network_forward.1} parent=1 // pred_region
      %425 = dma.done [#allocation3], 128
    $region33: #{neural_network_forward.1} parent=1 // pred_fallthru
      _
    %426 = vsyncpa [#allocation3], 1

</llo_original>
